<compile_context>
chip_gen: v6e
topology: v6e:2x2x1
jax: 0.10.0
libtpu: 0.0.40
codegen_flags: <defaults>
</compile_context>

<pallas_src>
import functools
import math

import jax
import jax.numpy as jnp
from jax import lax
from jax.experimental import pallas as pl
from jax.experimental.pallas import tpu as pltpu


def make_positional_encoding(max_len, dim, dtype=jnp.float32):
    """Faithful port of PositionalEncoding.__init__ buffer construction."""
    position = jnp.arange(max_len, dtype=jnp.float32)[:, None]
    dim_even = ((dim + 1) // 2) * 2      # == dim for even dim (same div_term)
    div_term = jnp.exp(
        jnp.arange(0, dim_even, 2, dtype=jnp.float32)
        * -(math.log(10000.0) / dim_even))
    sin_part = jnp.sin(position * div_term)
    cos_div = div_term if dim % 2 == 0 else div_term[:-1]
    cos_part = jnp.cos(position * cos_div)
    pe = jnp.zeros((max_len, dim), dtype=jnp.float32)
    pe = pe.at[:, 0::2].set(sin_part)
    pe = pe.at[:, 1::2].set(cos_part)
    return pe.astype(dtype)


def _embed_vmem_table_kernel(ids_ref, w_ref, *rest, scale, add_pe, batch):
    """Fast path: table resident in VMEM, gather = one-hot MXU matmul.

    ids_ref: (T, 1) int32 VMEM block of token ids
    w_ref:   (Vp, Dp) embedding table, constant-index block (VMEM-resident)
    pe_ref:  (TL, Dp) positional-encoding rows for this block   [if add_pe]
    sel_ref: (T, TL)  position->token one-hot expansion matrix  [if batch > 1]
    o_ref:   (T, Dp)  output block
    """
    if add_pe:
        if batch == 1:
            pe_ref, o_ref = rest
        else:
            pe_ref, sel_ref, o_ref = rest
    else:
        (o_ref,) = rest

    T = o_ref.shape[0]
    Vp = w_ref.shape[0]

    ids = ids_ref[...]                                          # (T, 1) int32
    vocab_iota = lax.broadcasted_iota(jnp.int32, (T, Vp), 1)
    onehot = (ids == vocab_iota).astype(w_ref.dtype)            # (T, Vp)
    # Exact gather: exactly one 1.0 per row, f32 accumulation on the MXU.
    rows = jnp.dot(onehot, w_ref[...], preferred_element_type=jnp.float32)

    emb = rows * scale if scale != 1.0 else rows
    if add_pe:
        pe = pe_ref[...].astype(jnp.float32)                    # (TL, Dp)
        if batch == 1:                                          # TL == T
            emb = emb + pe
        else:                                                   # expand pos->tok
            emb = emb + jnp.dot(sel_ref[...], pe,
                                preferred_element_type=jnp.float32)
    o_ref[...] = emb.astype(o_ref.dtype)


def _embed_hbm_gather_kernel(ids_ref, w_hbm, *rest, scale, add_pe, batch,
                             unroll):
    """Slow path: per-row HBM DMA gathers, double-buffered across grid steps.

    ids_ref: (n_pad,) int32 scalar-prefetch (SMEM) token ids
    w_hbm:   (V, D) embedding table left in HBM (pl.ANY)
    pe_ref:  (TL, D) PE rows for this block                      [if add_pe]
    sel_ref: (T, TL) position->token one-hot expansion matrix    [if batch > 1]
    o_ref:   (T, D)  output block
    rows:    (2, T, D) VMEM double-buffer for gathered rows
    sem:     DMA((2,)) one byte-counting semaphore per slot
    """
    if add_pe:
        if batch == 1:
            pe_ref, o_ref, rows, sem = rest
        else:
            pe_ref, sel_ref, o_ref, rows, sem = rest
    else:
        o_ref, rows, sem = rest

    T = o_ref.shape[0]
    i = pl.program_id(0)
    nb = pl.num_programs(0)

    def issue_block(block, slot):
        base = block * T

        @pl.loop(0, T // unroll)
        def _issue(g):
            t0 = pl.multiple_of(g * unroll, unroll)
            for u in range(unroll):              # unrolled descriptor pushes
                t = t0 + u
                idx = ids_ref[base + t]
                pltpu.make_async_copy(
                    w_hbm.at[pl.ds(idx, 1), :],
                    rows.at[slot, pl.ds(t, 1), :],
                    sem.at[slot],
                ).start()

    @pl.when(i == 0)                             # prologue: prime slot 0
    def _():
        issue_block(0, 0)

    @pl.when(i + 1 < nb)                         # lookahead: next block's
    def _():                                     # gathers overlap this block's
        issue_block(i + 1, (i + 1) % 2)          # compute + writeback

    slot = i % 2
    # All T row copies of this slot signal the same byte-counting DMA
    # semaphore; one descriptor covering the whole (T, D) slot waits for the
    # aggregate byte count instead of T per-row waits.
    pltpu.make_async_copy(rows.at[1 - slot], rows.at[slot], sem.at[slot]).wait()

    emb = rows[slot].astype(jnp.float32)
    if scale != 1.0:
        emb = emb * scale
    if add_pe:
        pe = pe_ref[...].astype(jnp.float32)
        if batch == 1:
            emb = emb + pe
        else:
            emb = emb + jnp.dot(sel_ref[...], pe,
                                preferred_element_type=jnp.float32)
    o_ref[...] = emb.astype(o_ref.dtype)


def _vmem_capacity_bytes():
    try:
        cap = getattr(pltpu.get_tpu_info(), "vmem_capacity_bytes", None)
        if cap:
            return int(cap)
    except Exception:
        pass
    return 64 * 1024 * 1024          # conservative default (v7x-sized)


def _ceil_div(a, b):
    return -(-a // b)


def _round_up(a, b):
    return _ceil_div(a, b) * b


def embeddings_forward(source, weight, pe=None, *, position_encoding=True,
                       fast_table_bytes=4 * 1024 * 1024,
                       force_hbm_gather=False):
    """Embeddings.forward with step=None (dropout p=0 -> identity).

    source: [len, batch] int token ids
    weight: [vocab, dim] embedding table (row at padding_idx already zero)
    pe:     [max_len, dim] positional-encoding buffer (required when
            position_encoding=True)
    returns [len, batch, dim] in weight.dtype
    """
    L, B = source.shape
    V, D = weight.shape
    n_tok = L * B
    wdt = weight.dtype
    wbytes = jnp.dtype(wdt).itemsize

    if position_encoding:
        if pe is None:
            raise ValueError("position_encoding=True requires the pe buffer")
        if L > pe.shape[0]:
            raise ValueError(
                f"sequence length {L} exceeds positional-encoding max_len "
                f"{pe.shape[0]}")

    # Clamp ids so a bad token id can never drive an out-of-bounds gather.
    ids = jnp.clip(source.reshape(-1).astype(jnp.int32), 0, V - 1)

    # ---- generation-aware sizing -------------------------------------------
    cap = _vmem_capacity_bytes()
    budget = (3 * cap) // 8                    # ~24 MiB v7x, ~48 MiB v5e/v6e
    vmem_limit = int(min(cap // 2, 96 * 1024 * 1024))

    Dp = _round_up(D, 128)                     # lane-dense output stores
    Vp = _round_up(V, 128)
    table_bytes = Vp * Dp * wbytes
    use_fast = ((not force_hbm_gather)
                and table_bytes <= min(fast_table_bytes, budget // 4))

    unit = 8 * B                               # tokens per whole (8, D) tile
    total_units = _ceil_div(n_tok, unit)

    def fast_bytes(u):
        T, TL = unit * u, 8 * u
        est = 2 * table_bytes                  # resident table (+ spare buf)
        est += 2 * T * Dp * wbytes             # double-buffered output
        est += 2 * T * 4                       # double-buffered ids
        est += T * Vp * (4 + wbytes)           # iota + one-hot intermediates
        est += 2 * T * Dp * 4                  # f32 emb / expanded pe
        if position_encoding:
            est += 2 * TL * Dp * 4
            if B > 1:
                est += T * TL * 4              # resident expansion matrix
        return est

    def slow_bytes(u):
        T, TL = unit * u, 8 * u
        est = 2 * T * D * wbytes               # gather double-buffer
        est += 2 * T * D * wbytes              # double-buffered output
        est += 2 * T * D * 4                   # f32 emb / expanded pe
        if position_encoding:
            est += 2 * TL * D * 4
            if B > 1:
                est += T * TL * 4
        return est

    def pick_units(start_tokens, bytes_fn):
        u = max(1, min(start_tokens // unit, total_units))
        if total_units >= 2:                   # keep >= 2 grid steps: both v7x
            u = min(u, _ceil_div(total_units, 2))   # cores busy / real pipeline
        while u > 1 and bytes_fn(u) > budget:
            u //= 2
        return u

    if use_fast:
        u = pick_units(4096, fast_bytes)
    else:
        # Cap the gather path at 1024 tokens/block: bounds outstanding DMA
        # descriptors (<= 2*T in flight) and keeps the prefetched ids small.
        u = pick_units(1024, slow_bytes)

    T = unit * u
    TL = 8 * u                                 # sequence positions per block
    nb = _ceil_div(n_tok, T)
    n_pad = nb * T
    L_pad = nb * TL
    if n_pad > n_tok:
        ids = jnp.pad(ids, (0, n_pad - n_tok))  # pad with a valid row id (0)

    scale = float(math.sqrt(D)) if position_encoding else 1.0

    pe_rows = None
    sel = None
    if position_encoding:
        # One PE row per sequence position of the padded grid (fetched once per
        # position, not once per batch element).
        avail = min(pe.shape[0], L_pad)        # avail >= L (checked above)
        pe_rows = pe[:avail].astype(jnp.float32)
        if avail < L_pad:
            pe_rows = jnp.pad(pe_rows, ((0, L_pad - avail), (0, 0)))
        if B > 1:
            # Grid-invariant position->token one-hot expansion matrix, built
            # once and kept VMEM-resident via a constant-index BlockSpec.
            tok = jnp.arange(T, dtype=jnp.int32)[:, None] // B
            pos = jnp.arange(TL, dtype=jnp.int32)[None, :]
            sel = (tok == pos).astype(jnp.float32)              # (T, TL)

    if use_fast:
        # ---- fast path: table resident in VMEM, one-hot MXU gather ---------
        w_pad = weight
        if (Vp, Dp) != (V, D):
            w_pad = jnp.pad(weight, ((0, Vp - V), (0, Dp - D)))
        operands = [ids.reshape(n_pad, 1), w_pad]
        in_specs = [pl.BlockSpec((T, 1), lambda i: (i, 0)),
                    pl.BlockSpec((Vp, Dp), lambda i: (0, 0))]   # resident
        if position_encoding:
            pe_pad = pe_rows
            if Dp != D:
                pe_pad = jnp.pad(pe_rows, ((0, 0), (0, Dp - D)))
            operands.append(pe_pad)
            in_specs.append(pl.BlockSpec((TL, Dp), lambda i: (i, 0)))
            if B > 1:
                operands.append(sel)
                in_specs.append(pl.BlockSpec((T, TL), lambda i: (0, 0)))

        kernel = functools.partial(_embed_vmem_table_kernel, scale=scale,
                                   add_pe=position_encoding, batch=B)
        out = pl.pallas_call(
            kernel,
            out_shape=jax.ShapeDtypeStruct((n_pad, Dp), wdt),
            grid_spec=pltpu.PrefetchScalarGridSpec(
                num_scalar_prefetch=0,
                grid=(nb,),
                in_specs=in_specs,
                out_specs=pl.BlockSpec((T, Dp), lambda i: (i, 0)),
            ),
            compiler_params=pltpu.CompilerParams(
                dimension_semantics=("parallel",),
                vmem_limit_bytes=vmem_limit),
        )(*operands)
        out = out[:n_tok, :D]
    else:
        # ---- HBM-gather path: manual DMAs double-buffered across steps -----
        # TODO(synk): for extremely long len*batch the prefetched id array
        # should be chunked across multiple calls (1-D SMEM pads to next pow2).
        operands = [ids, weight]
        in_specs = [pl.BlockSpec(memory_space=pl.ANY)]          # table in HBM
        if position_encoding:
            operands.append(pe_rows)
            in_specs.append(pl.BlockSpec((TL, D), lambda i, ids_ref: (i, 0)))
            if B > 1:
                operands.append(sel)
                in_specs.append(
                    pl.BlockSpec((T, TL), lambda i, ids_ref: (0, 0)))

        kernel = functools.partial(_embed_hbm_gather_kernel, scale=scale,
                                   add_pe=position_encoding, batch=B, unroll=8)
        out = pl.pallas_call(
            kernel,
            out_shape=jax.ShapeDtypeStruct((n_pad, D), wdt),
            grid_spec=pltpu.PrefetchScalarGridSpec(
                num_scalar_prefetch=1,
                grid=(nb,),
                in_specs=in_specs,
                out_specs=pl.BlockSpec((T, D), lambda i, ids_ref: (i, 0)),
                scratch_shapes=[
                    pltpu.VMEM((2, T, D), wdt),      # gather double-buffer
                    pltpu.SemaphoreType.DMA((2,)),   # one sem per slot
                ],
            ),
            # "arbitrary": the cross-block lookahead assumes in-order steps all
            # on one core (slot priming happens at grid step 0).
            compiler_params=pltpu.CompilerParams(
                dimension_semantics=("arbitrary",),
                vmem_limit_bytes=vmem_limit),
        )(*operands)
        out = out[:n_tok]

    # TODO(synk): decode path (step is not None) adds pe[step] to every token;
    # only the step=None (full-sequence) path is implemented here.
    return out.reshape(L, B, D)


if __name__ == "__main__":
    key = jax.random.PRNGKey(0)
    k_w, k_s, k_w2, k_s2 = jax.random.split(key, 4)

    # Small shapes consistent with the module: seq len 8, batch 2, vocab 50,
    # embedding dim 128, padding idx 1, max_len 5000.
    L, B = 8, 2
    V, D = 50, 128
    pad_idx = 1
    max_len = 5000

    weight = jax.random.normal(k_w, (V, D), dtype=jnp.float32)
    weight = weight.at[pad_idx].set(0.0)       # nn.Embedding padding_idx row
    pe = make_positional_encoding(max_len, D)
    source = jax.random.randint(k_s, (L, B), 0, V, dtype=jnp.int32)
    sqrt_d = math.sqrt(D)

    # 1) position_encoding=True (fast, VMEM-resident-table path).
    out = jax.block_until_ready(
        embeddings_forward(source, weight, pe, position_encoding=True))
    ref = weight[source] * sqrt_d + pe[:L][:, None, :]
    assert out.shape == (L, B, D) and out.dtype == jnp.float32
    assert jnp.allclose(out, ref, atol=1e-4, rtol=1e-5), float(
        jnp.max(jnp.abs(out - ref)))

    # 2) position_encoding=False (no PE, no sqrt(dim) scaling).
    out2 = jax.block_until_ready(
        embeddings_forward(source, weight, position_encoding=False))
    assert jnp.allclose(out2, weight[source], atol=1e-4, rtol=1e-5)

    # 3) batch == 1 (direct PE add branch).
    src1 = source[:, :1]
    out3 = jax.block_until_ready(
        embeddings_forward(src1, weight, pe, position_encoding=True))
    ref3 = weight[src1] * sqrt_d + pe[:L][:, None, :]
    assert jnp.allclose(out3, ref3, atol=1e-4, rtol=1e-5)

    # 4) Forced HBM-gather path (large-vocab code path) with 2 grid steps so
    #    the cross-block double-buffered gathers are exercised.
    L2, B2, V2, D2 = 16, 2, 64, 128
    w2 = jax.random.normal(k_w2, (V2, D2), dtype=jnp.float32)
    pe2 = make_positional_encoding(64, D2)
    src2 = jax.random.randint(k_s2, (L2, B2), 0, V2, dtype=jnp.int32)
    out4 = jax.block_until_ready(
        embeddings_forward(src2, w2, pe2, position_encoding=True,
                           force_hbm_gather=True))
    ref4 = w2[src2] * math.sqrt(D2) + pe2[:L2][:, None, :]
    assert jnp.allclose(out4, ref4, atol=1e-4, rtol=1e-5), float(
        jnp.max(jnp.abs(out4 - ref4)))

    print("KERNEL_OK")
</pallas_src>

<mosaic_0001>
module attributes {stable_mosaic.version = 11 : i64} {
  func.func @_embed_vmem_table_kernel(%arg0: i32, %arg1: memref<16x1xi32, #tpu.memory_space<vmem>>, %arg2: memref<128x128xf32, #tpu.memory_space<vmem>>, %arg3: memref<8x128xf32, #tpu.memory_space<vmem>>, %arg4: memref<16x8xf32, #tpu.memory_space<vmem>>, %arg5: memref<16x128xf32, #tpu.memory_space<vmem>>) attributes {dimension_semantics = [#tpu.dimension_semantics<parallel>], iteration_bounds = array<i64: 1>, scalar_prefetch = 0 : i64, scratch_operands = 0 : i64, tpu.core_type = #tpu.core_type<tc>, window_params = [{transform_indices = @transform_0, window_bounds = array<i64: 16, 1>}, {pipeline_mode = #tpu.pipeline_mode<synchronous>, transform_indices = @transform_1, window_bounds = array<i64: 128, 128>}, {transform_indices = @transform_2, window_bounds = array<i64: 8, 128>}, {pipeline_mode = #tpu.pipeline_mode<synchronous>, transform_indices = @transform_3, window_bounds = array<i64: 16, 8>}, {transform_indices = @transform_4, window_bounds = array<i64: 16, 128>}]} {
    %c0 = arith.constant 0 : index
    %c0_0 = arith.constant 0 : index
    %0 = vector.load %arg1[%c0, %c0_0] : memref<16x1xi32, #tpu.memory_space<vmem>>, vector<16x1xi32>
    %1 = tpu.iota {dimensions = array<i32: 1>} : vector<16x128xi32>
    %2 = vector.broadcast %0 : vector<16x1xi32> to vector<16x128xi32>
    %3 = arith.cmpi eq, %2, %1 : vector<16x128xi32>
    %4 = arith.extui %3 : vector<16x128xi1> to vector<16x128xi32>
    %5 = arith.sitofp %4 : vector<16x128xi32> to vector<16x128xf32>
    %c0_1 = arith.constant 0 : index
    %c0_2 = arith.constant 0 : index
    %6 = vector.load %arg2[%c0_1, %c0_2] : memref<128x128xf32, #tpu.memory_space<vmem>>, vector<128x128xf32>
    %cst = arith.constant dense<0.000000e+00> : vector<16x128xf32>
    %7 = tpu.matmul %5, %6, %cst {dimension_numbers = #tpu.dot_dimension_numbers<[1], [0], [0], [1], [0, 0, 1, 1], [], []>} : vector<16x128xf32>, vector<128x128xf32>, vector<16x128xf32> -> vector<16x128xf32>
    %cst_3 = arith.constant 11.3137083 : f32
    %8 = vector.broadcast %cst_3 : f32 to vector<16x128xf32>
    %9 = arith.mulf %7, %8 : vector<16x128xf32>
    %c0_4 = arith.constant 0 : index
    %c0_5 = arith.constant 0 : index
    %10 = vector.load %arg3[%c0_4, %c0_5] : memref<8x128xf32, #tpu.memory_space<vmem>>, vector<8x128xf32>
    %c0_6 = arith.constant 0 : index
    %c0_7 = arith.constant 0 : index
    %11 = vector.load %arg4[%c0_6, %c0_7] : memref<16x8xf32, #tpu.memory_space<vmem>>, vector<16x8xf32>
    %cst_8 = arith.constant dense<0.000000e+00> : vector<16x128xf32>
    %12 = tpu.matmul %11, %10, %cst_8 {dimension_numbers = #tpu.dot_dimension_numbers<[1], [0], [0], [1], [0, 0, 1, 1], [], []>} : vector<16x8xf32>, vector<8x128xf32>, vector<16x128xf32> -> vector<16x128xf32>
    %13 = arith.addf %9, %12 : vector<16x128xf32>
    %c0_9 = arith.constant 0 : index
    %c0_10 = arith.constant 0 : index
    %14 = vector.load %arg5[%c0_9, %c0_10] : memref<16x128xf32, #tpu.memory_space<vmem>>, vector<16x128xf32>
    tpu.vector_store %arg5[%c0_9, %c0_10], %13 {strides = array<i32>} : memref<16x128xf32, #tpu.memory_space<vmem>>, vector<16x128xf32>,
    return
  }
  func.func @transform_0(%arg0: i32) -> (i32, i32) {
    %c0_i32 = arith.constant 0 : i32
    %c0_i32_0 = arith.constant 0 : i32
    return %arg0, %c0_i32 : i32, i32
  }
  func.func @transform_1(%arg0: i32) -> (i32, i32) {
    %c0_i32 = arith.constant 0 : i32
    %c0_i32_0 = arith.constant 0 : i32
    %c0_i32_1 = arith.constant 0 : i32
    return %c0_i32, %c0_i32_0 : i32, i32
  }
  func.func @transform_2(%arg0: i32) -> (i32, i32) {
    %c0_i32 = arith.constant 0 : i32
    %c0_i32_0 = arith.constant 0 : i32
    return %arg0, %c0_i32 : i32, i32
  }
  func.func @transform_3(%arg0: i32) -> (i32, i32) {
    %c0_i32 = arith.constant 0 : i32
    %c0_i32_0 = arith.constant 0 : i32
    %c0_i32_1 = arith.constant 0 : i32
    return %c0_i32, %c0_i32_0 : i32, i32
  }
  func.func @transform_4(%arg0: i32) -> (i32, i32) {
    %c0_i32 = arith.constant 0 : i32
    %c0_i32_0 = arith.constant 0 : i32
    return %arg0, %c0_i32 : i32, i32
  }
}

</mosaic_0001>

<llo_original>
// kernel: tpu_custom_call.1
$region0: #{tpu_custom_call.1}
  #allocation0 [shape = 'u32[]', space=smem, size = 0x4, offset = 0x4, fixed_abs, tag = 'smem constant byte address 0x4 - core index']
  #allocation1 [shape = 'u32[144,128]{1,0:T(1,128)}', space=vmem, size = 0x12000, scoped, tag = 'internal scratch']
  %s0 = inlined_call_operand.vmem [shape: s32[16,1], index: 0, kind: input, shape index: {}]
  %s1 = inlined_call_operand.hbm [shape: f32[128,128], index: 1, kind: input, shape index: {}]
  %s2 = inlined_call_operand.vmem [shape: f32[8,128], index: 2, kind: input, shape index: {}]
  %s3 = inlined_call_operand.vmem [shape: f32[16,8], index: 3, kind: input, shape index: {}]
  %s4 = inlined_call_operand.hbm [shape: f32[16,128], index: 4, kind: output, shape index: {}]
  %s5 = sld [smem:[#allocation0]]
  $region30: #{tpu_custom_call.1} parent=0
    _
  %s7 = ssub.s32 1, %s5
  %s8 = scalar_select 0, %s7, %s5
  $region1: #{tpu_custom_call.1} parent=0
    #allocation2 [shape = 'u8[65536]{0}', space=vmem, size = 0x10000, scoped, tag = 'input window, operand 1, single buffered']
    #allocation3 [shape = 's32[1]{0}', space=sflag, size = 0x4, scoped, tag = 'scoped memory for tpu_custom_call.1']
    #allocation4 [shape = 's32[1]{0}', space=sflag, size = 0x4, scoped, tag = 'scoped memory for tpu_custom_call.1']
    #allocation5 [shape = 'u8[8192]{0}', space=vmem, size = 0x2000, scoped, tag = 'output window, operand 0, single buffered']
    %9 = vsyncpa [#allocation3], 0
    %10 = vsyncpa [#allocation4], 0
    // Predicated region
    $region2: #{tpu_custom_call.1} parent=1 // pred_check
      _
    $region3: #{tpu_custom_call.1} parent=1 // pred_check_branch
      %12 = sbr.rel (0) target = $region5
    $region4: #{tpu_custom_call.1} parent=1 // pred_region
      _
    $region5: #{tpu_custom_call.1} parent=1 // pred_fallthru
      _
    // Predicated region
    $region6: #{tpu_custom_call.1} parent=1 // pred_check
      _
    $region7: #{tpu_custom_call.1} parent=1 // pred_check_branch
      %14 = sbr.rel (0) target = $region9
    $region8: #{tpu_custom_call.1} parent=1 // pred_region
      %s16 = ssub.s32 2048, 2048
      %17 = vsyncadd [#allocation3], %s16
      %s18 = sshll.u32 [#allocation2], 4
      %s19 = int_to_ptr.vmem [resolvable:$true] %s18
      %24 = dma.hbm_to_vmem [thread:$0]  %s1, 2048, %s19, [#allocation3], 128, 128, 8
    $region9: #{tpu_custom_call.1} parent=1 // pred_fallthru
      _
    // Predicated region
    $region10: #{tpu_custom_call.1} parent=1 // pred_check
      _
    $region11: #{tpu_custom_call.1} parent=1 // pred_check_branch
      %26 = sbr.rel (0) target = $region13
    $region12: #{tpu_custom_call.1} parent=1 // pred_region
      _
    $region13: #{tpu_custom_call.1} parent=1 // pred_fallthru
      _
    // Predicated region
    $region14: #{tpu_custom_call.1} parent=1 // pred_check
      _
    $region15: #{tpu_custom_call.1} parent=1 // pred_check_branch
      %28 = sbr.rel (0) target = $region17
    $region16: #{tpu_custom_call.1} parent=1 // pred_region
      _
    $region17: #{tpu_custom_call.1} parent=1 // pred_fallthru
      _
    // Predicated region
    $region18: #{tpu_custom_call.1} parent=1 // pred_check
      _
    $region19: #{tpu_custom_call.1} parent=1 // pred_check_branch
      %30 = sbr.rel (0) target = $region21
    $region20: #{tpu_custom_call.1} parent=1 // pred_region
      %31 = dma.done [#allocation3], 2048
    $region21: #{tpu_custom_call.1} parent=1 // pred_fallthru
      _
    %v32 = vld [vmem:[%s0] sm:$0xff]
    %v33 = vld [vmem:[%s0 + $0x8] sm:$0xff]
    %v34 = vlaneseq
    %v35 = vand.u32 %v34, 127
    %36 = vset.pattern.permute.xlu0 0
    %37 = vperm.xlu0 %36, %v32
    %v38 = vpop.permute.xlu0 %37
    %39 = vset.pattern.permute.xlu0 0
    %40 = vperm.xlu0 %39, %v33
    %v41 = vpop.permute.xlu0 %40
    %vm42 = vcmp.eq.s32.totalorder %v38, %v35
    %vm43 = vcmp.eq.s32.totalorder %v41, %v35
    %v44 = vsel %vm42, 1, 0
    %v45 = vsel %vm43, 1, 0
    %v46 = vcvt.s32.f32 %v44
    %v47 = vcvt.s32.f32 %v45
    %v48 = vld [vmem:[#allocation2] sm:$0xff]
    %v49 = vld [vmem:[#allocation2 + $0x8] sm:$0xff]
    %v50 = vld [vmem:[#allocation2 + $0x10] sm:$0xff]
    %v51 = vld [vmem:[#allocation2 + $0x18] sm:$0xff]
    %v52 = vld [vmem:[#allocation2 + $0x20] sm:$0xff]
    %v53 = vld [vmem:[#allocation2 + $0x28] sm:$0xff]
    %v54 = vld [vmem:[#allocation2 + $0x30] sm:$0xff]
    %v55 = vld [vmem:[#allocation2 + $0x38] sm:$0xff]
    %v56 = vld [vmem:[#allocation2 + $0x40] sm:$0xff]
    %v57 = vld [vmem:[#allocation2 + $0x48] sm:$0xff]
    %v58 = vld [vmem:[#allocation2 + $0x50] sm:$0xff]
    %v59 = vld [vmem:[#allocation2 + $0x58] sm:$0xff]
    %v60 = vld [vmem:[#allocation2 + $0x60] sm:$0xff]
    %v61 = vld [vmem:[#allocation2 + $0x68] sm:$0xff]
    %v62 = vld [vmem:[#allocation2 + $0x70] sm:$0xff]
    %v63 = vld [vmem:[#allocation2 + $0x78] sm:$0xff]
    %64 = vmatprep.subr.mxu0 0.0
    %65 = vmatpush1.msra.mxu0 %v63
    %66 = vmatprep.subr.mxu0 0.0
    %67 = vmatpush1.msra.mxu0 %v62
    %68 = vmatprep.subr.mxu0 0.0
    %69 = vmatpush1.msra.mxu0 %v61
    %70 = vmatprep.subr.mxu0 0.0
    %71 = vmatpush1.msra.mxu0 %v60
    %72 = vmatprep.subr.mxu0 0.0
    %73 = vmatpush1.msra.mxu0 %v59
    %74 = vmatprep.subr.mxu0 0.0
    %75 = vmatpush1.msra.mxu0 %v58
    %76 = vmatprep.subr.mxu0 0.0
    %77 = vmatpush1.msra.mxu0 %v57
    %78 = vmatprep.subr.mxu0 0.0
    %79 = vmatpush1.msra.mxu0 %v56
    %80 = vmatprep.subr.mxu0 0.0
    %81 = vmatpush1.msra.mxu0 %v55
    %82 = vmatprep.subr.mxu0 0.0
    %83 = vmatpush1.msra.mxu0 %v54
    %84 = vmatprep.subr.mxu0 0.0
    %85 = vmatpush1.msra.mxu0 %v53
    %86 = vmatprep.subr.mxu0 0.0
    %87 = vmatpush1.msra.mxu0 %v52
    %88 = vmatprep.subr.mxu0 0.0
    %89 = vmatpush1.msra.mxu0 %v51
    %90 = vmatprep.subr.mxu0 0.0
    %91 = vmatpush1.msra.mxu0 %v50
    %92 = vmatprep.subr.mxu0 0.0
    %93 = vmatpush1.msra.mxu0 %v49
    %94 = vmatprep.subr.mxu0 0.0
    %95 = vmatpush1.msra.mxu0 %v48
    %96 = vmatprep.subr.mxu0 0.0
    %97 = vmatpush2.msra.mxu0 0.0
    %98 = vmatprep.subr.mxu0 0.0
    %99 = vmatpush2.msra.mxu0 0.0
    %100 = vmatprep.subr.mxu0 0.0
    %101 = vmatpush2.msra.mxu0 0.0
    %102 = vmatprep.subr.mxu0 0.0
    %103 = vmatpush2.msra.mxu0 0.0
    %104 = vmatprep.subr.mxu0 0.0
    %105 = vmatpush2.msra.mxu0 0.0
    %106 = vmatprep.subr.mxu0 0.0
    %107 = vmatpush2.msra.mxu0 0.0
    %108 = vmatprep.subr.mxu0 0.0
    %109 = vmatpush2.msra.mxu0 0.0
    %110 = vmatprep.subr.mxu0 0.0
    %111 = vmatpush2.msra.mxu0 0.0
    %112 = vmatprep.subr.mxu0 0.0
    %113 = vmatpush2.msra.mxu0 0.0
    %114 = vmatprep.subr.mxu0 0.0
    %115 = vmatpush2.msra.mxu0 0.0
    %116 = vmatprep.subr.mxu0 0.0
    %117 = vmatpush2.msra.mxu0 0.0
    %118 = vmatprep.subr.mxu0 0.0
    %119 = vmatpush2.msra.mxu0 0.0
    %120 = vmatprep.subr.mxu0 0.0
    %121 = vmatpush2.msra.mxu0 0.0
    %122 = vmatprep.subr.mxu0 0.0
    %123 = vmatpush2.msra.mxu0 0.0
    %124 = vmatprep.subr.mxu0 0.0
    %125 = vmatpush2.msra.mxu0 0.0
    %126 = vmatprep.subr.mxu0 0.0
    %127 = vmatpush2.msra.mxu0 0.0
    %128 = vmatprep.mubr.f32.mxu0 0.0
    %129 = vmatmul.mubr.f32.gmra.mxu0 %v46
    %v130 = vpop.f32.mrf.mxu0
    %v131 = vadd.f32 0.0, %v130
    %v132 = vpop.f32.mrf.mxu0
    %133 = vmatprep.mubr.f32.mxu0 0.0
    %134 = vmatmul.mubr.f32.gmra.mxu0 %v47
    %v135 = vpop.f32.mrf.mxu0
    %v136 = vadd.f32 0.0, %v135
    %v137 = vpop.f32.mrf.mxu0
    %138 = vdwg.mxu0
    %v139 = vmul.f32 %v131, 11.313708
    %v140 = vmul.f32 %v136, 11.313708
    %v141 = vld [vmem:[%s2] sm:$0xff]
    %v142 = vld [vmem:[%s3] sm:$0xff]
    %v143 = vld [vmem:[%s3 + $0x8] sm:$0xff]
    %vm144 = vcmask 64512
    %v146 = vsel %vm144, %v142, 0
    %v149 = vsel %vm144, %v143, 0
    %151 = vmatprep.subr.mxu0 0.0
    %152 = vmatpush1.msra.mxu0 0.0
    %153 = vmatprep.subr.mxu0 0.0
    %154 = vmatpush1.msra.mxu0 0.0
    %155 = vmatprep.subr.mxu0 0.0
    %156 = vmatpush1.msra.mxu0 0.0
    %157 = vmatprep.subr.mxu0 0.0
    %158 = vmatpush1.msra.mxu0 0.0
    %159 = vmatprep.subr.mxu0 0.0
    %160 = vmatpush1.msra.mxu0 0.0
    %161 = vmatprep.subr.mxu0 0.0
    %162 = vmatpush1.msra.mxu0 0.0
    %163 = vmatprep.subr.mxu0 0.0
    %164 = vmatpush1.msra.mxu0 0.0
    %165 = vmatprep.subr.mxu0 0.0
    %166 = vmatpush1.msra.mxu0 0.0
    %167 = vmatprep.subr.mxu0 0.0
    %168 = vmatpush1.msra.mxu0 0.0
    %169 = vmatprep.subr.mxu0 0.0
    %170 = vmatpush1.msra.mxu0 0.0
    %171 = vmatprep.subr.mxu0 0.0
    %172 = vmatpush1.msra.mxu0 0.0
    %173 = vmatprep.subr.mxu0 0.0
    %174 = vmatpush1.msra.mxu0 0.0
    %175 = vmatprep.subr.mxu0 0.0
    %176 = vmatpush1.msra.mxu0 0.0
    %177 = vmatprep.subr.mxu0 0.0
    %178 = vmatpush1.msra.mxu0 0.0
    %179 = vmatprep.subr.mxu0 0.0
    %180 = vmatpush1.msra.mxu0 0.0
    %181 = vmatprep.subr.mxu0 0.0
    %182 = vmatpush1.msra.mxu0 %v141
    %183 = vmatprep.subr.mxu0 0.0
    %184 = vmatpush2.msra.mxu0 0.0
    %185 = vmatprep.subr.mxu0 0.0
    %186 = vmatpush2.msra.mxu0 0.0
    %187 = vmatprep.subr.mxu0 0.0
    %188 = vmatpush2.msra.mxu0 0.0
    %189 = vmatprep.subr.mxu0 0.0
    %190 = vmatpush2.msra.mxu0 0.0
    %191 = vmatprep.subr.mxu0 0.0
    %192 = vmatpush2.msra.mxu0 0.0
    %193 = vmatprep.subr.mxu0 0.0
    %194 = vmatpush2.msra.mxu0 0.0
    %195 = vmatprep.subr.mxu0 0.0
    %196 = vmatpush2.msra.mxu0 0.0
    %197 = vmatprep.subr.mxu0 0.0
    %198 = vmatpush2.msra.mxu0 0.0
    %199 = vmatprep.subr.mxu0 0.0
    %200 = vmatpush2.msra.mxu0 0.0
    %201 = vmatprep.subr.mxu0 0.0
    %202 = vmatpush2.msra.mxu0 0.0
    %203 = vmatprep.subr.mxu0 0.0
    %204 = vmatpush2.msra.mxu0 0.0
    %205 = vmatprep.subr.mxu0 0.0
    %206 = vmatpush2.msra.mxu0 0.0
    %207 = vmatprep.subr.mxu0 0.0
    %208 = vmatpush2.msra.mxu0 0.0
    %209 = vmatprep.subr.mxu0 0.0
    %210 = vmatpush2.msra.mxu0 0.0
    %211 = vmatprep.subr.mxu0 0.0
    %212 = vmatpush2.msra.mxu0 0.0
    %213 = vmatprep.subr.mxu0 0.0
    %214 = vmatpush2.msra.mxu0 0.0
    %215 = vmatprep.mubr.f32.mxu0 0.0
    %216 = vmatmul.mubr.f32.gmra.mxu0 %v146
    %v217 = vpop.f32.mrf.mxu0
    %v218 = vadd.f32 0.0, %v217
    %v219 = vpop.f32.mrf.mxu0
    %220 = vmatprep.mubr.f32.mxu0 0.0
    %221 = vmatmul.mubr.f32.gmra.mxu0 %v149
    %v222 = vpop.f32.mrf.mxu0
    %v223 = vadd.f32 0.0, %v222
    %v224 = vpop.f32.mrf.mxu0
    %225 = vdwg.mxu0
    %v226 = vadd.f32 %v139, %v218
    %v227 = vadd.f32 %v140, %v223
    %228 = vst [vmem:[#allocation5] sm:$0xff] %v226
    %229 = vst [vmem:[#allocation5 + $0x8] sm:$0xff] %v227
    // Predicated region
    $region22: #{tpu_custom_call.1} parent=1 // pred_check
      _
    $region23: #{tpu_custom_call.1} parent=1 // pred_check_branch
      %231 = sbr.rel (0) target = $region25
    $region24: #{tpu_custom_call.1} parent=1 // pred_region
      %s233 = ssub.s32 256, 256
      %234 = vsyncadd [#allocation4], %s233
      %s235 = sshll.u32 [#allocation5], 4
      %s236 = int_to_ptr.vmem [resolvable:$true] %s235
      %241 = dma.vmem_to_hbm [thread:$0]  %s236, 256, %s4, [#allocation4], 128, 128, 8
    $region25: #{tpu_custom_call.1} parent=1 // pred_fallthru
      _
    // Predicated region
    $region26: #{tpu_custom_call.1} parent=1 // pred_check
      _
    $region27: #{tpu_custom_call.1} parent=1 // pred_check_branch
      %243 = sbr.rel (0) target = $region29
    $region28: #{tpu_custom_call.1} parent=1 // pred_region
      %244 = dma.done [#allocation4], 256
    $region29: #{tpu_custom_call.1} parent=1 // pred_fallthru
      _
    %245 = vsyncpa [#allocation3], 1
    %246 = vsyncpa [#allocation4], 1

</llo_original>
